<compile_context>
chip_gen: v6e
topology: v6e:2x2x1
jax: 0.10.0
libtpu: 0.0.40
codegen_flags: <defaults>
</compile_context>

<pallas_src>
import functools

import jax
import jax.numpy as jnp
from jax.experimental import pallas as pl
from jax.experimental.pallas import tpu as pltpu

INPUT_SIZE = 16
HIDDEN_SIZE = 15
OUTPUT_SIZE = 3

# Lane-padded internal sizes (MXU/VPU lane width = 128).
HIDDEN_PAD = 128
OUTPUT_PAD = 128


def _round_up(x, m):
    return ((x + m - 1) // m) * m


def qnetwork_kernel(x_ref, w1_ref, b1_ref, w2_ref, b2_ref, o_ref):
    """Fused MLP tile: Z1 = X @ W1 + b1; A1 = relu(Z1); Z2 = A1 @ W2 + b2."""
    x = x_ref[...]                                             # (TB, 16)  bf16/f32
    z1 = jnp.dot(x, w1_ref[...],
                 preferred_element_type=jnp.float32) + b1_ref[...]   # (TB, 128) f32
    a1 = jnp.maximum(z1, 0.0)
    z2 = jnp.dot(a1.astype(w2_ref.dtype), w2_ref[...],
                 preferred_element_type=jnp.float32) + b2_ref[...]   # (TB, 128) f32
    o_ref[...] = z2.astype(o_ref.dtype)


def _pad2d(a, rows, cols):
    return jnp.pad(a, ((0, rows - a.shape[0]), (0, cols - a.shape[1])))


@functools.partial(jax.jit, static_argnames=("block_batch", "use_bf16"))
def qnetwork_forward(x, w1, b1, w2, b2, *, block_batch=2048, use_bf16=True):
    """x: [B, 16] float32. w1: [16, 15], b1: [15], w2: [15, 3], b2: [3].

    Returns [B, 3] float32 (Y = relu(X @ W1 + b1) @ W2 + b2).
    """
    B = x.shape[0]
    compute_dtype = jnp.bfloat16 if use_bf16 else jnp.float32

    # Batch tile: multiple of 8 sublanes, capped by block_batch, padded batch is
    # a multiple of the tile so every grid step sees a full (TB, 16) block.
    TB = min(block_batch, _round_up(B, 8))
    Bp = _round_up(B, TB)
    num_tiles = Bp // TB

    # Pad batch (extra rows are discarded below) and cast the streamed operand.
    x_p = jnp.pad(x, ((0, Bp - B), (0, 0))).astype(compute_dtype)

    # Zero-pad params to lane-dense shapes; zeros are exact in bf16 and inert
    # through ReLU, so the math is unchanged.
    w1_p = _pad2d(w1, INPUT_SIZE, HIDDEN_PAD).astype(compute_dtype)
    b1_p = _pad2d(b1.reshape(1, HIDDEN_SIZE), 1, HIDDEN_PAD).astype(jnp.float32)
    w2_p = _pad2d(w2, HIDDEN_PAD, OUTPUT_PAD).astype(compute_dtype)
    b2_p = _pad2d(b2.reshape(1, OUTPUT_SIZE), 1, OUTPUT_PAD).astype(jnp.float32)

    bytes_accessed = (
        x_p.size * x_p.dtype.itemsize
        + Bp * OUTPUT_PAD * 4
        + w1_p.size * w1_p.dtype.itemsize
        + w2_p.size * w2_p.dtype.itemsize
        + b1_p.size * 4
        + b2_p.size * 4
    )
    cost = pl.CostEstimate(
        flops=2 * Bp * (INPUT_SIZE * HIDDEN_PAD + HIDDEN_PAD * OUTPUT_PAD),
        transcendentals=0,
        bytes_accessed=bytes_accessed,
    )

    out_padded = pl.pallas_call(
        qnetwork_kernel,
        out_shape=jax.ShapeDtypeStruct((Bp, OUTPUT_PAD), jnp.float32),
        grid=(num_tiles,),
        in_specs=[
            pl.BlockSpec((TB, INPUT_SIZE), lambda i: (i, 0)),        # x: streamed
            pl.BlockSpec((INPUT_SIZE, HIDDEN_PAD), lambda i: (0, 0)),  # w1: resident
            pl.BlockSpec((1, HIDDEN_PAD), lambda i: (0, 0)),           # b1: resident
            pl.BlockSpec((HIDDEN_PAD, OUTPUT_PAD), lambda i: (0, 0)),  # w2: resident
            pl.BlockSpec((1, OUTPUT_PAD), lambda i: (0, 0)),           # b2: resident
        ],
        out_specs=pl.BlockSpec((TB, OUTPUT_PAD), lambda i: (i, 0)),
        compiler_params=pltpu.CompilerParams(
            dimension_semantics=("parallel",),   # megacore split on v7x
        ),
        cost_estimate=cost,
    )(x_p, w1_p, b1_p, w2_p, b2_p)

    return out_padded[:B, :OUTPUT_SIZE]


def reference_forward(x, w1, b1, w2, b2, *, use_bf16=True):
    """Plain-JAX reference mirroring the kernel's dtype handling."""
    cd = jnp.bfloat16 if use_bf16 else jnp.float32
    z1 = jnp.dot(x.astype(cd), w1.astype(cd),
                 preferred_element_type=jnp.float32) + b1
    a1 = jnp.maximum(z1, 0.0)
    z2 = jnp.dot(a1.astype(cd), w2.astype(cd),
                 preferred_element_type=jnp.float32) + b2
    return z2


def init_params(key):
    """Init mirroring nn.Linear's uniform(-1/sqrt(fan_in), +1/sqrt(fan_in)).

    Weights are stored as [in, out] (transposed vs PyTorch's [out, in]).
    """
    k1, k2, k3, k4 = jax.random.split(key, 4)
    bound1 = 1.0 / jnp.sqrt(jnp.float32(INPUT_SIZE))
    bound2 = 1.0 / jnp.sqrt(jnp.float32(HIDDEN_SIZE))
    w1 = jax.random.uniform(k1, (INPUT_SIZE, HIDDEN_SIZE), jnp.float32, -bound1, bound1)
    b1 = jax.random.uniform(k2, (HIDDEN_SIZE,), jnp.float32, -bound1, bound1)
    w2 = jax.random.uniform(k3, (HIDDEN_SIZE, OUTPUT_SIZE), jnp.float32, -bound2, bound2)
    b2 = jax.random.uniform(k4, (OUTPUT_SIZE,), jnp.float32, -bound2, bound2)
    return w1, b1, w2, b2


if __name__ == "__main__":
    key = jax.random.PRNGKey(0)
    kx, kx2, kp = jax.random.split(key, 3)
    w1, b1, w2, b2 = init_params(kp)

    # Small single-tile case (matches typical getMove-style calls, batched).
    batch = 8
    x = jax.random.normal(kx, (batch, INPUT_SIZE), jnp.float32)
    out = qnetwork_forward(x, w1, b1, w2, b2)
    out = jax.block_until_ready(out)
    ref = reference_forward(x, w1, b1, w2, b2)
    assert out.shape == (batch, OUTPUT_SIZE)
    assert jnp.allclose(out, ref, atol=1e-3, rtol=1e-3)

    # Multi-tile case with a ragged tail (exercises grid + batch padding).
    batch2 = 300
    x2 = jax.random.normal(kx2, (batch2, INPUT_SIZE), jnp.float32)
    out2 = qnetwork_forward(x2, w1, b1, w2, b2, block_batch=128)
    out2 = jax.block_until_ready(out2)
    ref2 = reference_forward(x2, w1, b1, w2, b2)
    assert out2.shape == (batch2, OUTPUT_SIZE)
    assert jnp.allclose(out2, ref2, atol=1e-3, rtol=1e-3)

    print("KERNEL_OK")
</pallas_src>

<mosaic_0001>
module attributes {stable_mosaic.version = 11 : i64} {
  func.func @qnetwork_kernel(%arg0: i32, %arg1: memref<8x16xbf16, #tpu.memory_space<vmem>>, %arg2: memref<16x128xbf16, #tpu.memory_space<vmem>>, %arg3: memref<1x128xf32, #tpu.memory_space<vmem>>, %arg4: memref<128x128xbf16, #tpu.memory_space<vmem>>, %arg5: memref<1x128xf32, #tpu.memory_space<vmem>>, %arg6: memref<8x128xf32, #tpu.memory_space<vmem>>) attributes {dimension_semantics = [#tpu.dimension_semantics<parallel>], iteration_bounds = array<i64: 1>, scalar_prefetch = 0 : i64, scratch_operands = 0 : i64, tpu.core_type = #tpu.core_type<tc>, window_params = [{transform_indices = @transform_0, window_bounds = array<i64: 8, 16>}, {pipeline_mode = #tpu.pipeline_mode<synchronous>, transform_indices = @transform_1, window_bounds = array<i64: 16, 128>}, {pipeline_mode = #tpu.pipeline_mode<synchronous>, transform_indices = @transform_2, window_bounds = array<i64: 1, 128>}, {pipeline_mode = #tpu.pipeline_mode<synchronous>, transform_indices = @transform_3, window_bounds = array<i64: 128, 128>}, {pipeline_mode = #tpu.pipeline_mode<synchronous>, transform_indices = @transform_4, window_bounds = array<i64: 1, 128>}, {transform_indices = @transform_5, window_bounds = array<i64: 8, 128>}]} {
    %c0 = arith.constant 0 : index
    %c0_0 = arith.constant 0 : index
    %0 = vector.load %arg1[%c0, %c0_0] : memref<8x16xbf16, #tpu.memory_space<vmem>>, vector<8x16xbf16>
    %c0_1 = arith.constant 0 : index
    %c0_2 = arith.constant 0 : index
    %1 = vector.load %arg2[%c0_1, %c0_2] : memref<16x128xbf16, #tpu.memory_space<vmem>>, vector<16x128xbf16>
    %cst = arith.constant dense<0.000000e+00> : vector<8x128xf32>
    %2 = tpu.matmul %0, %1, %cst {dimension_numbers = #tpu.dot_dimension_numbers<[1], [0], [0], [1], [0, 0, 1, 1], [], []>} : vector<8x16xbf16>, vector<16x128xbf16>, vector<8x128xf32> -> vector<8x128xf32>
    %c0_3 = arith.constant 0 : index
    %c0_4 = arith.constant 0 : index
    %3 = vector.load %arg3[%c0_3, %c0_4] : memref<1x128xf32, #tpu.memory_space<vmem>>, vector<1x128xf32>
    %4 = vector.broadcast %3 : vector<1x128xf32> to vector<8x128xf32>
    %5 = arith.addf %2, %4 : vector<8x128xf32>
    %cst_5 = arith.constant 0.000000e+00 : f32
    %6 = vector.broadcast %cst_5 : f32 to vector<8x128xf32>
    %7 = arith.maximumf %5, %6 : vector<8x128xf32>
    %8 = arith.truncf %7 : vector<8x128xf32> to vector<8x128xbf16>
    %c0_6 = arith.constant 0 : index
    %c0_7 = arith.constant 0 : index
    %9 = vector.load %arg4[%c0_6, %c0_7] : memref<128x128xbf16, #tpu.memory_space<vmem>>, vector<128x128xbf16>
    %cst_8 = arith.constant dense<0.000000e+00> : vector<8x128xf32>
    %10 = tpu.matmul %8, %9, %cst_8 {dimension_numbers = #tpu.dot_dimension_numbers<[1], [0], [0], [1], [0, 0, 1, 1], [], []>} : vector<8x128xbf16>, vector<128x128xbf16>, vector<8x128xf32> -> vector<8x128xf32>
    %c0_9 = arith.constant 0 : index
    %c0_10 = arith.constant 0 : index
    %11 = vector.load %arg5[%c0_9, %c0_10] : memref<1x128xf32, #tpu.memory_space<vmem>>, vector<1x128xf32>
    %12 = vector.broadcast %11 : vector<1x128xf32> to vector<8x128xf32>
    %13 = arith.addf %10, %12 : vector<8x128xf32>
    %c0_11 = arith.constant 0 : index
    %c0_12 = arith.constant 0 : index
    %14 = vector.load %arg6[%c0_11, %c0_12] : memref<8x128xf32, #tpu.memory_space<vmem>>, vector<8x128xf32>
    tpu.vector_store %arg6[%c0_11, %c0_12], %13 {strides = array<i32>} : memref<8x128xf32, #tpu.memory_space<vmem>>, vector<8x128xf32>,
    return
  }
  func.func @transform_0(%arg0: i32) -> (i32, i32) {
    %c0_i32 = arith.constant 0 : i32
    %c0_i32_0 = arith.constant 0 : i32
    return %arg0, %c0_i32 : i32, i32
  }
  func.func @transform_1(%arg0: i32) -> (i32, i32) {
    %c0_i32 = arith.constant 0 : i32
    %c0_i32_0 = arith.constant 0 : i32
    %c0_i32_1 = arith.constant 0 : i32
    return %c0_i32, %c0_i32_0 : i32, i32
  }
  func.func @transform_2(%arg0: i32) -> (i32, i32) {
    %c0_i32 = arith.constant 0 : i32
    %c0_i32_0 = arith.constant 0 : i32
    %c0_i32_1 = arith.constant 0 : i32
    return %c0_i32, %c0_i32_0 : i32, i32
  }
  func.func @transform_3(%arg0: i32) -> (i32, i32) {
    %c0_i32 = arith.constant 0 : i32
    %c0_i32_0 = arith.constant 0 : i32
    %c0_i32_1 = arith.constant 0 : i32
    return %c0_i32, %c0_i32_0 : i32, i32
  }
  func.func @transform_4(%arg0: i32) -> (i32, i32) {
    %c0_i32 = arith.constant 0 : i32
    %c0_i32_0 = arith.constant 0 : i32
    %c0_i32_1 = arith.constant 0 : i32
    return %c0_i32, %c0_i32_0 : i32, i32
  }
  func.func @transform_5(%arg0: i32) -> (i32, i32) {
    %c0_i32 = arith.constant 0 : i32
    %c0_i32_0 = arith.constant 0 : i32
    return %arg0, %c0_i32 : i32, i32
  }
}

</mosaic_0001>

<llo_original>
// kernel: qnetwork_forward.1
$region0: #{qnetwork_forward.1}
  #allocation0 [shape = 'u32[]', space=smem, size = 0x4, offset = 0x4, fixed_abs, tag = 'smem constant byte address 0x4 - core index']
  #allocation1 [shape = 'u32[144,128]{1,0:T(1,128)}', space=vmem, size = 0x12000, scoped, tag = 'internal scratch']
  %s0 = inlined_call_operand.vmem [shape: bf16[8,16], index: 0, kind: input, shape index: {}]
  %s1 = inlined_call_operand.vmem [shape: bf16[16,128], index: 1, kind: input, shape index: {}]
  %s2 = inlined_call_operand.vmem [shape: f32[1,128], index: 2, kind: input, shape index: {}]
  %s3 = inlined_call_operand.vmem [shape: bf16[128,128], index: 3, kind: input, shape index: {}]
  %s4 = inlined_call_operand.vmem [shape: f32[1,128], index: 4, kind: input, shape index: {}]
  %s5 = inlined_call_operand.vmem [shape: f32[8,128], index: 5, kind: output, shape index: {}]
  %s6 = sld [smem:[#allocation0]]
  $region30: #{qnetwork_forward.1} parent=0
    _
  %s8 = ssub.s32 1, %s6
  %s9 = scalar_select 0, %s8, %s6
  // Predicated region
  $region2: #{qnetwork_forward.1} parent=0 // pred_check
    _
  $region3: #{qnetwork_forward.1} parent=0 // pred_check_branch
    %11 = sbr.rel (0) target = $region5
  $region4: #{qnetwork_forward.1} parent=0 // pred_region
    _
  $region5: #{qnetwork_forward.1} parent=0 // pred_fallthru
    _
  // Predicated region
  $region6: #{qnetwork_forward.1} parent=0 // pred_check
    _
  $region7: #{qnetwork_forward.1} parent=0 // pred_check_branch
    %13 = sbr.rel (0) target = $region9
  $region8: #{qnetwork_forward.1} parent=0 // pred_region
    _
  $region9: #{qnetwork_forward.1} parent=0 // pred_fallthru
    _
  // Predicated region
  $region10: #{qnetwork_forward.1} parent=0 // pred_check
    _
  $region11: #{qnetwork_forward.1} parent=0 // pred_check_branch
    %15 = sbr.rel (0) target = $region13
  $region12: #{qnetwork_forward.1} parent=0 // pred_region
    _
  $region13: #{qnetwork_forward.1} parent=0 // pred_fallthru
    _
  // Predicated region
  $region14: #{qnetwork_forward.1} parent=0 // pred_check
    _
  $region15: #{qnetwork_forward.1} parent=0 // pred_check_branch
    %17 = sbr.rel (0) target = $region17
  $region16: #{qnetwork_forward.1} parent=0 // pred_region
    _
  $region17: #{qnetwork_forward.1} parent=0 // pred_fallthru
    _
  // Predicated region
  $region18: #{qnetwork_forward.1} parent=0 // pred_check
    _
  $region19: #{qnetwork_forward.1} parent=0 // pred_check_branch
    %19 = sbr.rel (0) target = $region21
  $region20: #{qnetwork_forward.1} parent=0 // pred_region
    _
  $region21: #{qnetwork_forward.1} parent=0 // pred_fallthru
    _
  %v21 = vld [vmem:[%s0] sm:$0xf]
  %v22 = vld [vmem:[%s1] sm:$0xf]
  %v23 = vld [vmem:[%s1 + $0x4] sm:$0xf]
  %v24 = vld [vmem:[%s2] sm:$0x1]
  %v26 = vlaneseq
  %v27 = vshrl.u32 %v26, 7
  %v28 = vsub.s32 0, %v27
  %v29 = vrot.slane %v24, %v28
  %v33 = vunpack.c.l.b16 %v22
  %v34 = vunpack.c.l.b16 %v23
  %v35 = vpack.c.b16 %v34, %v33
  %vm37 = vcmask 130048
  %v39 = vsel %vm37, %v21, 0
  %41 = vmatprep.subr.bf16.mxu0 0
  %42 = vmatpush1.bf16.msra.mxu0 0
  %43 = vmatprep.subr.bf16.mxu0 0
  %44 = vmatpush1.bf16.msra.mxu0 0
  %45 = vmatprep.subr.bf16.mxu0 0
  %46 = vmatpush1.bf16.msra.mxu0 0
  %47 = vmatprep.subr.bf16.mxu0 0
  %48 = vmatpush1.bf16.msra.mxu0 0
  %49 = vmatprep.subr.bf16.mxu0 0
  %50 = vmatpush1.bf16.msra.mxu0 0
  %51 = vmatprep.subr.bf16.mxu0 0
  %52 = vmatpush1.bf16.msra.mxu0 0
  %53 = vmatprep.subr.bf16.mxu0 0
  %54 = vmatpush1.bf16.msra.mxu0 0
  %55 = vmatprep.subr.bf16.mxu0 0
  %56 = vmatpush1.bf16.msra.mxu0 %v35
  %57 = vmatprep.subr.bf16.mxu0 0
  %58 = vmatpush2.bf16.msra.mxu0 0
  %59 = vmatprep.subr.bf16.mxu0 0
  %60 = vmatpush2.bf16.msra.mxu0 0
  %61 = vmatprep.subr.bf16.mxu0 0
  %62 = vmatpush2.bf16.msra.mxu0 0
  %63 = vmatprep.subr.bf16.mxu0 0
  %64 = vmatpush2.bf16.msra.mxu0 0
  %65 = vmatprep.subr.bf16.mxu0 0
  %66 = vmatpush2.bf16.msra.mxu0 0
  %67 = vmatprep.subr.bf16.mxu0 0
  %68 = vmatpush2.bf16.msra.mxu0 0
  %69 = vmatprep.subr.bf16.mxu0 0
  %70 = vmatpush2.bf16.msra.mxu0 0
  %71 = vmatprep.subr.bf16.mxu0 0
  %72 = vmatpush2.bf16.msra.mxu0 0
  %73 = vmatprep.mubr.bf16.mxu0 0
  %74 = vmatmul.mubr.bf16.gmra.mxu0 %v39
  %v75 = vpop.f32.mrf.mxu0
  %v76 = vadd.f32 %v29, %v75
  %v77 = vpop.f32.mrf.mxu0
  %v78 = vpop.f32.mrf.mxu0
  %v79 = vpop.f32.mrf.mxu0
  %80 = vdwg.mxu0
  %v81 = vmax.f32 %v76, 0.0
  %v82 = vpack.c.bf16 %v81, %v81
  %v83 = vld [vmem:[%s3] sm:$0xf]
  %v84 = vld [vmem:[%s3 + $0x4] sm:$0xf]
  %v85 = vld [vmem:[%s3 + $0x8] sm:$0xf]
  %v86 = vld [vmem:[%s3 + $0xc] sm:$0xf]
  %v87 = vld [vmem:[%s3 + $0x10] sm:$0xf]
  %v88 = vld [vmem:[%s3 + $0x14] sm:$0xf]
  %v89 = vld [vmem:[%s3 + $0x18] sm:$0xf]
  %v90 = vld [vmem:[%s3 + $0x1c] sm:$0xf]
  %v91 = vld [vmem:[%s3 + $0x20] sm:$0xf]
  %v92 = vld [vmem:[%s3 + $0x24] sm:$0xf]
  %v93 = vld [vmem:[%s3 + $0x28] sm:$0xf]
  %v94 = vld [vmem:[%s3 + $0x2c] sm:$0xf]
  %v95 = vld [vmem:[%s3 + $0x30] sm:$0xf]
  %v96 = vld [vmem:[%s3 + $0x34] sm:$0xf]
  %v97 = vld [vmem:[%s3 + $0x38] sm:$0xf]
  %v98 = vld [vmem:[%s3 + $0x3c] sm:$0xf]
  %v99 = vld [vmem:[%s4] sm:$0x1]
  %v101 = vlaneseq
  %v102 = vshrl.u32 %v101, 7
  %v103 = vsub.s32 0, %v102
  %v104 = vrot.slane %v99, %v103
  %v122 = vunpack.c.l.b16 %v83
  %v123 = vunpack.c.l.b16 %v84
  %v124 = vunpack.c.l.b16 %v85
  %v125 = vunpack.c.l.b16 %v86
  %v126 = vunpack.c.l.b16 %v87
  %v127 = vunpack.c.l.b16 %v88
  %v128 = vunpack.c.l.b16 %v89
  %v129 = vunpack.c.l.b16 %v90
  %v130 = vunpack.c.l.b16 %v91
  %v131 = vunpack.c.l.b16 %v92
  %v132 = vunpack.c.l.b16 %v93
  %v133 = vunpack.c.l.b16 %v94
  %v134 = vunpack.c.l.b16 %v95
  %v135 = vunpack.c.l.b16 %v96
  %v136 = vunpack.c.l.b16 %v97
  %v137 = vunpack.c.l.b16 %v98
  %v138 = vpack.c.b16 %v123, %v122
  %v139 = vpack.c.b16 %v125, %v124
  %v140 = vpack.c.b16 %v127, %v126
  %v141 = vpack.c.b16 %v129, %v128
  %v142 = vpack.c.b16 %v131, %v130
  %v143 = vpack.c.b16 %v133, %v132
  %v144 = vpack.c.b16 %v135, %v134
  %v145 = vpack.c.b16 %v137, %v136
  %154 = vmatprep.subr.bf16.mxu0 0
  %155 = vmatpush1.bf16.msra.mxu0 %v145
  %156 = vmatprep.subr.bf16.mxu0 0
  %157 = vmatpush1.bf16.msra.mxu0 %v144
  %158 = vmatprep.subr.bf16.mxu0 0
  %159 = vmatpush1.bf16.msra.mxu0 %v143
  %160 = vmatprep.subr.bf16.mxu0 0
  %161 = vmatpush1.bf16.msra.mxu0 %v142
  %162 = vmatprep.subr.bf16.mxu0 0
  %163 = vmatpush1.bf16.msra.mxu0 %v141
  %164 = vmatprep.subr.bf16.mxu0 0
  %165 = vmatpush1.bf16.msra.mxu0 %v140
  %166 = vmatprep.subr.bf16.mxu0 0
  %167 = vmatpush1.bf16.msra.mxu0 %v139
  %168 = vmatprep.subr.bf16.mxu0 0
  %169 = vmatpush1.bf16.msra.mxu0 %v138
  %170 = vmatprep.subr.bf16.mxu0 0
  %171 = vmatpush2.bf16.msra.mxu0 0
  %172 = vmatprep.subr.bf16.mxu0 0
  %173 = vmatpush2.bf16.msra.mxu0 0
  %174 = vmatprep.subr.bf16.mxu0 0
  %175 = vmatpush2.bf16.msra.mxu0 0
  %176 = vmatprep.subr.bf16.mxu0 0
  %177 = vmatpush2.bf16.msra.mxu0 0
  %178 = vmatprep.subr.bf16.mxu0 0
  %179 = vmatpush2.bf16.msra.mxu0 0
  %180 = vmatprep.subr.bf16.mxu0 0
  %181 = vmatpush2.bf16.msra.mxu0 0
  %182 = vmatprep.subr.bf16.mxu0 0
  %183 = vmatpush2.bf16.msra.mxu0 0
  %184 = vmatprep.subr.bf16.mxu0 0
  %185 = vmatpush2.bf16.msra.mxu0 0
  %186 = vmatprep.mubr.bf16.mxu0 0
  %187 = vmatmul.mubr.bf16.gmra.mxu0 %v82
  %v188 = vpop.f32.mrf.mxu0
  %v189 = vadd.f32 %v104, %v188
  %v190 = vpop.f32.mrf.mxu0
  %v191 = vpop.f32.mrf.mxu0
  %v192 = vpop.f32.mrf.mxu0
  %193 = vdwg.mxu0
  %194 = vst [vmem:[%s5] sm:$0xff] %v189
  // Predicated region
  $region22: #{qnetwork_forward.1} parent=0 // pred_check
    _
  $region23: #{qnetwork_forward.1} parent=0 // pred_check_branch
    %196 = sbr.rel (0) target = $region25
  $region24: #{qnetwork_forward.1} parent=0 // pred_region
    _
  $region25: #{qnetwork_forward.1} parent=0 // pred_fallthru
    _
  // Predicated region
  $region26: #{qnetwork_forward.1} parent=0 // pred_check
    _
  $region27: #{qnetwork_forward.1} parent=0 // pred_check_branch
    %198 = sbr.rel (0) target = $region29
  $region28: #{qnetwork_forward.1} parent=0 // pred_region
    _
  $region29: #{qnetwork_forward.1} parent=0 // pred_fallthru
    _

</llo_original>
